<compile_context>
chip_gen: v6e
topology: v6e:2x2x1
jax: 0.10.0
libtpu: 0.0.40
codegen_flags: <defaults>
</compile_context>

<pallas_src>
import functools

import jax
import jax.numpy as jnp
from jax.experimental import pallas as pl
from jax.experimental.pallas import tpu as pltpu


def actor_kernel(s_ref, w1_ref, b1_ref, wh_ref, bh_ref, disc_ref, cont_ref, *, nd):
    # Hidden layer: relu(state @ W1 + b1)   (f32 MXU accumulate)
    a = jnp.dot(s_ref[...], w1_ref[...], preferred_element_type=jnp.float32)
    a = jnp.maximum(a + b1_ref[...], 0.0)

    # Fused heads: single matmul producing [TB, Nd + Nc]
    h = jnp.dot(a, wh_ref[...], preferred_element_type=jnp.float32) + bh_ref[...]

    # Column mask: first `nd` columns are the discrete logits.
    col = jax.lax.broadcasted_iota(jnp.int32, h.shape, dimension=1)
    is_disc = col < nd

    # Masked, max-stabilized softmax over the discrete columns only.
    neg_inf = jnp.float32(-jnp.inf)
    masked = jnp.where(is_disc, h, neg_inf)
    m = jnp.max(masked, axis=-1, keepdims=True)
    e = jnp.exp(jnp.where(is_disc, h - m, neg_inf))          # exp(-inf) == 0
    inv = pl.reciprocal(jnp.sum(e, axis=-1, keepdims=True))  # exact reciprocal (EUP)
    disc = e * inv

    # Two narrow stores straight from vregs (no wrapper-side output slicing).
    disc_ref[...] = disc[:, :nd].astype(disc_ref.dtype)
    cont_ref[...] = jnp.tanh(h)[:, nd:].astype(cont_ref.dtype)


def _round_up(x, m):
    return (x + m - 1) // m * m


def actor_forward(state, params):
    """state: [B, state_dim] f32. params: dict with pre-transposed / pre-fused weights.

    Returns (discrete_probs [B, Nd], continuous_actions [B, Nc]).
    """
    w1, b1 = params["w1"], params["b1"]          # [S, H], [1, H]
    wh, bh = params["wh"], params["bh"]          # [H, Nd+Nc], [1, Nd+Nc]  (fused at init)
    nd = params["wd"].shape[1]
    nc = params["wc"].shape[1]
    assert nd > 0 and nc > 0, "kernel assumes both heads are non-empty"

    B, S = state.shape
    H = w1.shape[1]
    nh = nd + nc

    # Row-tiled grid. Per-row VMEM footprint is only ~(S + nh)*4 bytes, so
    # large tiles are cheap; weights/biases stay VMEM-resident (index_map
    # -> (0, 0)). For larger batches keep >= 2 grid steps so v7x's two
    # TensorCores both get work; tiny batches run as a single step.
    MAX_TB = 4096
    if B >= 64:
        n_steps = max(2, pl.cdiv(B, MAX_TB))
        TB = _round_up(pl.cdiv(B, n_steps), 8)
    else:
        TB = _round_up(B, 8)
    grid = (pl.cdiv(B, TB),)   # ragged last block: padded rows never written back

    kernel = functools.partial(actor_kernel, nd=nd)

    cost = pl.CostEstimate(
        flops=2 * B * (S * H + H * nh),
        transcendentals=2 * B * nh,                 # exp + tanh (approx.)
        bytes_accessed=4 * (B * S + S * H + H + H * nh + nh + B * nh),
    )

    disc, cont = pl.pallas_call(
        kernel,
        out_shape=(
            jax.ShapeDtypeStruct((B, nd), jnp.float32),
            jax.ShapeDtypeStruct((B, nc), jnp.float32),
        ),
        grid=grid,
        in_specs=[
            pl.BlockSpec((TB, S), lambda i: (i, 0)),    # state: row-tiled
            pl.BlockSpec((S, H), lambda i: (0, 0)),     # W1: VMEM-resident
            pl.BlockSpec((1, H), lambda i: (0, 0)),     # b1: VMEM-resident
            pl.BlockSpec((H, nh), lambda i: (0, 0)),    # fused head W: resident
            pl.BlockSpec((1, nh), lambda i: (0, 0)),    # fused head b: resident
        ],
        out_specs=(
            pl.BlockSpec((TB, nd), lambda i: (i, 0)),   # discrete probs
            pl.BlockSpec((TB, nc), lambda i: (i, 0)),   # continuous actions
        ),
        compiler_params=pltpu.CompilerParams(
            dimension_semantics=("parallel",)),         # batch shards across v7x's 2 TCs
        cost_estimate=cost,
    )(state, w1, b1, wh, bh)

    return disc, cont


def init_actor_params(key, state_dim, hidden, num_discrete, num_continuous):
    """Deterministic synthetic init (uniform, PyTorch-Linear-style bounds)."""
    ks = jax.random.split(key, 6)

    def lin(kw, kb, fan_in, fan_out):
        bound = 1.0 / jnp.sqrt(jnp.float32(fan_in))
        # stored pre-transposed as [in, out]
        w = jax.random.uniform(kw, (fan_in, fan_out), jnp.float32, -bound, bound)
        b = jax.random.uniform(kb, (1, fan_out), jnp.float32, -bound, bound)
        return w, b

    w1, b1 = lin(ks[0], ks[1], state_dim, hidden)
    wd, bd = lin(ks[2], ks[3], hidden, num_discrete)
    wc, bc = lin(ks[4], ks[5], hidden, num_continuous)
    # Fuse the two heads once at init (not per forward call).
    wh = jnp.concatenate([wd, wc], axis=1)       # [H, Nd+Nc]
    bh = jnp.concatenate([bd, bc], axis=1)       # [1, Nd+Nc]
    # TODO(synk): l2 (hidden_sizes[1]) and max_action exist in __init__ but are
    # unused by forward(); omitted from the kernel on purpose.
    return {"w1": w1, "b1": b1, "wd": wd, "bd": bd, "wc": wc, "bc": bc,
            "wh": wh, "bh": bh}


def actor_forward_ref(state, params):
    a = jnp.maximum(state @ params["w1"] + params["b1"], 0.0)
    logits = a @ params["wd"] + params["bd"]
    disc = jax.nn.softmax(logits, axis=-1)
    cont = jnp.tanh(a @ params["wc"] + params["bc"])
    return disc, cont


if __name__ == "__main__":
    # Small shapes consistent with the module: state_dim=16, hidden=32,
    # 8 discrete actions, 4 continuous actions, batch=8.
    B, STATE_DIM, HIDDEN, N_DISC, N_CONT = 8, 16, 32, 8, 4

    key = jax.random.PRNGKey(0)
    k_state, k_params = jax.random.split(key)
    state = jax.random.normal(k_state, (B, STATE_DIM), jnp.float32)
    params = init_actor_params(k_params, STATE_DIM, HIDDEN, N_DISC, N_CONT)

    disc, cont = actor_forward(state, params)
    jax.block_until_ready((disc, cont))

    # Correctness check against a pure-JAX reference.
    disc_ref, cont_ref = actor_forward_ref(state, params)
    assert disc.shape == (B, N_DISC) and cont.shape == (B, N_CONT)
    assert jnp.allclose(disc, disc_ref, atol=1e-5, rtol=1e-5)
    assert jnp.allclose(cont, cont_ref, atol=1e-5, rtol=1e-5)
    # Sanity: discrete head is a probability distribution.
    assert jnp.allclose(jnp.sum(disc, axis=-1), 1.0, atol=1e-5)

    print("KERNEL_OK")
</pallas_src>

<mosaic_0001>
module attributes {stable_mosaic.version = 11 : i64} {
  func.func @actor_kernel(%arg0: i32, %arg1: memref<8x16xf32, #tpu.memory_space<vmem>>, %arg2: memref<16x32xf32, #tpu.memory_space<vmem>>, %arg3: memref<1x32xf32, #tpu.memory_space<vmem>>, %arg4: memref<32x12xf32, #tpu.memory_space<vmem>>, %arg5: memref<1x12xf32, #tpu.memory_space<vmem>>, %arg6: memref<8x8xf32, #tpu.memory_space<vmem>>, %arg7: memref<8x4xf32, #tpu.memory_space<vmem>>) attributes {dimension_semantics = [#tpu.dimension_semantics<parallel>], iteration_bounds = array<i64: 1>, scalar_prefetch = 0 : i64, scratch_operands = 0 : i64, tpu.core_type = #tpu.core_type<tc>, window_params = [{transform_indices = @transform_0, window_bounds = array<i64: 8, 16>}, {pipeline_mode = #tpu.pipeline_mode<synchronous>, transform_indices = @transform_1, window_bounds = array<i64: 16, 32>}, {pipeline_mode = #tpu.pipeline_mode<synchronous>, transform_indices = @transform_2, window_bounds = array<i64: 1, 32>}, {pipeline_mode = #tpu.pipeline_mode<synchronous>, transform_indices = @transform_3, window_bounds = array<i64: 32, 12>}, {pipeline_mode = #tpu.pipeline_mode<synchronous>, transform_indices = @transform_4, window_bounds = array<i64: 1, 12>}, {transform_indices = @transform_5, window_bounds = array<i64: 8, 8>}, {transform_indices = @transform_6, window_bounds = array<i64: 8, 4>}]} {
    %c0 = arith.constant 0 : index
    %c0_0 = arith.constant 0 : index
    %0 = vector.load %arg1[%c0, %c0_0] : memref<8x16xf32, #tpu.memory_space<vmem>>, vector<8x16xf32>
    %c0_1 = arith.constant 0 : index
    %c0_2 = arith.constant 0 : index
    %1 = vector.load %arg2[%c0_1, %c0_2] : memref<16x32xf32, #tpu.memory_space<vmem>>, vector<16x32xf32>
    %cst = arith.constant dense<0.000000e+00> : vector<8x32xf32>
    %2 = tpu.matmul %0, %1, %cst {dimension_numbers = #tpu.dot_dimension_numbers<[1], [0], [0], [1], [0, 0, 1, 1], [], []>} : vector<8x16xf32>, vector<16x32xf32>, vector<8x32xf32> -> vector<8x32xf32>
    %c0_3 = arith.constant 0 : index
    %c0_4 = arith.constant 0 : index
    %3 = vector.load %arg3[%c0_3, %c0_4] : memref<1x32xf32, #tpu.memory_space<vmem>>, vector<1x32xf32>
    %4 = vector.broadcast %3 : vector<1x32xf32> to vector<8x32xf32>
    %5 = arith.addf %2, %4 : vector<8x32xf32>
    %cst_5 = arith.constant 0.000000e+00 : f32
    %6 = vector.broadcast %cst_5 : f32 to vector<8x32xf32>
    %7 = arith.maximumf %5, %6 : vector<8x32xf32>
    %c0_6 = arith.constant 0 : index
    %c0_7 = arith.constant 0 : index
    %8 = vector.load %arg4[%c0_6, %c0_7] : memref<32x12xf32, #tpu.memory_space<vmem>>, vector<32x12xf32>
    %cst_8 = arith.constant dense<0.000000e+00> : vector<8x12xf32>
    %9 = tpu.matmul %7, %8, %cst_8 {dimension_numbers = #tpu.dot_dimension_numbers<[1], [0], [0], [1], [0, 0, 1, 1], [], []>} : vector<8x32xf32>, vector<32x12xf32>, vector<8x12xf32> -> vector<8x12xf32>
    %c0_9 = arith.constant 0 : index
    %c0_10 = arith.constant 0 : index
    %10 = vector.load %arg5[%c0_9, %c0_10] : memref<1x12xf32, #tpu.memory_space<vmem>>, vector<1x12xf32>
    %11 = vector.broadcast %10 : vector<1x12xf32> to vector<8x12xf32>
    %12 = arith.addf %9, %11 : vector<8x12xf32>
    %13 = tpu.iota {dimensions = array<i32: 1>} : vector<8x12xi32>
    %c8_i32 = arith.constant 8 : i32
    %14 = vector.broadcast %c8_i32 : i32 to vector<8x12xi32>
    %15 = arith.cmpi slt, %13, %14 : vector<8x12xi32>
    %cst_11 = arith.constant 0xFF800000 : f32
    %16 = vector.broadcast %cst_11 : f32 to vector<8x12xf32>
    %17 = arith.select %15, %12, %16 : vector<8x12xi1>, vector<8x12xf32>
    %cst_12 = arith.constant dense<0xFF800000> : vector<8xf32>
    %18 = vector.multi_reduction <maximumf>, %17, %cst_12 [1] : vector<8x12xf32> to vector<8xf32>
    %19 = vector.shape_cast %18 : vector<8xf32> to vector<8x1xf32>
    %20 = vector.broadcast %19 : vector<8x1xf32> to vector<8x12xf32>
    %21 = arith.subf %12, %20 : vector<8x12xf32>
    %cst_13 = arith.constant 0xFF800000 : f32
    %22 = vector.broadcast %cst_13 : f32 to vector<8x12xf32>
    %23 = arith.select %15, %21, %22 : vector<8x12xi1>, vector<8x12xf32>
    %24 = math.exp %23 : vector<8x12xf32>
    %cst_14 = arith.constant dense<0.000000e+00> : vector<8xf32>
    %25 = vector.multi_reduction <add>, %24, %cst_14 [1] : vector<8x12xf32> to vector<8xf32>
    %26 = vector.shape_cast %25 : vector<8xf32> to vector<8x1xf32>
    %27 = tpu.reciprocal %26 : vector<8x1xf32> -> vector<8x1xf32>
    %28 = vector.broadcast %27 : vector<8x1xf32> to vector<8x12xf32>
    %29 = arith.mulf %24, %28 : vector<8x12xf32>
    %30 = vector.extract_strided_slice %29 {offsets = [0, 0], sizes = [8, 8], strides = [1, 1]} : vector<8x12xf32> to vector<8x8xf32>
    %c0_15 = arith.constant 0 : index
    %c0_16 = arith.constant 0 : index
    %31 = vector.load %arg6[%c0_15, %c0_16] : memref<8x8xf32, #tpu.memory_space<vmem>>, vector<8x8xf32>
    tpu.vector_store %arg6[%c0_15, %c0_16], %30 {strides = array<i32>} : memref<8x8xf32, #tpu.memory_space<vmem>>, vector<8x8xf32>,
    %32 = math.tanh %12 : vector<8x12xf32>
    %33 = vector.extract_strided_slice %32 {offsets = [0, 8], sizes = [8, 4], strides = [1, 1]} : vector<8x12xf32> to vector<8x4xf32>
    %c0_17 = arith.constant 0 : index
    %c0_18 = arith.constant 0 : index
    %34 = vector.load %arg7[%c0_17, %c0_18] : memref<8x4xf32, #tpu.memory_space<vmem>>, vector<8x4xf32>
    tpu.vector_store %arg7[%c0_17, %c0_18], %33 {strides = array<i32>} : memref<8x4xf32, #tpu.memory_space<vmem>>, vector<8x4xf32>,
    return
  }
  func.func @transform_0(%arg0: i32) -> (i32, i32) {
    %c0_i32 = arith.constant 0 : i32
    %c0_i32_0 = arith.constant 0 : i32
    return %arg0, %c0_i32 : i32, i32
  }
  func.func @transform_1(%arg0: i32) -> (i32, i32) {
    %c0_i32 = arith.constant 0 : i32
    %c0_i32_0 = arith.constant 0 : i32
    %c0_i32_1 = arith.constant 0 : i32
    return %c0_i32, %c0_i32_0 : i32, i32
  }
  func.func @transform_2(%arg0: i32) -> (i32, i32) {
    %c0_i32 = arith.constant 0 : i32
    %c0_i32_0 = arith.constant 0 : i32
    %c0_i32_1 = arith.constant 0 : i32
    return %c0_i32, %c0_i32_0 : i32, i32
  }
  func.func @transform_3(%arg0: i32) -> (i32, i32) {
    %c0_i32 = arith.constant 0 : i32
    %c0_i32_0 = arith.constant 0 : i32
    %c0_i32_1 = arith.constant 0 : i32
    return %c0_i32, %c0_i32_0 : i32, i32
  }
  func.func @transform_4(%arg0: i32) -> (i32, i32) {
    %c0_i32 = arith.constant 0 : i32
    %c0_i32_0 = arith.constant 0 : i32
    %c0_i32_1 = arith.constant 0 : i32
    return %c0_i32, %c0_i32_0 : i32, i32
  }
  func.func @transform_5(%arg0: i32) -> (i32, i32) {
    %c0_i32 = arith.constant 0 : i32
    %c0_i32_0 = arith.constant 0 : i32
    return %arg0, %c0_i32 : i32, i32
  }
  func.func @transform_6(%arg0: i32) -> (i32, i32) {
    %c0_i32 = arith.constant 0 : i32
    %c0_i32_0 = arith.constant 0 : i32
    return %arg0, %c0_i32 : i32, i32
  }
}

</mosaic_0001>

<llo_original>
// kernel: tpu_custom_call.1
$region0: #{tpu_custom_call.1}
  #allocation0 [shape = 'u32[]', space=smem, size = 0x4, offset = 0x4, fixed_abs, tag = 'smem constant byte address 0x4 - core index']
  #allocation1 [shape = 'u32[144,128]{1,0:T(1,128)}', space=vmem, size = 0x12000, scoped, tag = 'internal scratch']
  %s0 = inlined_call_operand.vmem [shape: f32[8,16], index: 0, kind: input, shape index: {}]
  %s1 = inlined_call_operand.vmem [shape: f32[16,32], index: 1, kind: input, shape index: {}]
  %s2 = inlined_call_operand.vmem [shape: f32[1,32], index: 2, kind: input, shape index: {}]
  %s3 = inlined_call_operand.vmem [shape: f32[32,12], index: 3, kind: input, shape index: {}]
  %s4 = inlined_call_operand.vmem [shape: f32[1,12], index: 4, kind: input, shape index: {}]
  %s5 = inlined_call_operand.hbm [shape: f32[8,8], index: 5, kind: output, shape index: {0}]
  %s6 = inlined_call_operand.vmem [shape: f32[8,4], index: 6, kind: output, shape index: {1}]
  %7 = xla_tuple %s5, %s6
  %s8 = sld [smem:[#allocation0]]
  $region38: #{tpu_custom_call.1} parent=0
    _
  %s10 = ssub.s32 1, %s8
  %s11 = scalar_select 0, %s10, %s8
  $region1: #{tpu_custom_call.1} parent=0
    #allocation2 [shape = 'u8[4096]{0}', space=vmem, size = 0x1000, scoped, tag = 'output window, operand 0, single buffered']
    #allocation3 [shape = 's32[1]{0}', space=sflag, size = 0x4, scoped, tag = 'scoped memory for tpu_custom_call.1']
    %12 = vsyncpa [#allocation3], 0
    // Predicated region
    $region2: #{tpu_custom_call.1} parent=1 // pred_check
      _
    $region3: #{tpu_custom_call.1} parent=1 // pred_check_branch
      %14 = sbr.rel (0) target = $region5
    $region4: #{tpu_custom_call.1} parent=1 // pred_region
      _
    $region5: #{tpu_custom_call.1} parent=1 // pred_fallthru
      _
    // Predicated region
    $region6: #{tpu_custom_call.1} parent=1 // pred_check
      _
    $region7: #{tpu_custom_call.1} parent=1 // pred_check_branch
      %16 = sbr.rel (0) target = $region9
    $region8: #{tpu_custom_call.1} parent=1 // pred_region
      _
    $region9: #{tpu_custom_call.1} parent=1 // pred_fallthru
      _
    // Predicated region
    $region10: #{tpu_custom_call.1} parent=1 // pred_check
      _
    $region11: #{tpu_custom_call.1} parent=1 // pred_check_branch
      %18 = sbr.rel (0) target = $region13
    $region12: #{tpu_custom_call.1} parent=1 // pred_region
      _
    $region13: #{tpu_custom_call.1} parent=1 // pred_fallthru
      _
    // Predicated region
    $region14: #{tpu_custom_call.1} parent=1 // pred_check
      _
    $region15: #{tpu_custom_call.1} parent=1 // pred_check_branch
      %20 = sbr.rel (0) target = $region17
    $region16: #{tpu_custom_call.1} parent=1 // pred_region
      _
    $region17: #{tpu_custom_call.1} parent=1 // pred_fallthru
      _
    // Predicated region
    $region18: #{tpu_custom_call.1} parent=1 // pred_check
      _
    $region19: #{tpu_custom_call.1} parent=1 // pred_check_branch
      %22 = sbr.rel (0) target = $region21
    $region20: #{tpu_custom_call.1} parent=1 // pred_region
      _
    $region21: #{tpu_custom_call.1} parent=1 // pred_fallthru
      _
    %v23 = vld [vmem:[%s0] sm:$0xff]
    %v24 = vld [vmem:[%s1] sm:$0xff]
    %v25 = vld [vmem:[%s1 + $0x8] sm:$0xff]
    %v26 = vld [vmem:[%s2] sm:$0x1]
    %v28 = vlaneseq
    %v29 = vshrl.u32 %v28, 7
    %v30 = vsub.s32 0, %v29
    %v31 = vrot.slane %v26, %v30
    %vm33 = vcmask 130048
    %v35 = vsel %vm33, %v23, 0
    %37 = vmatprep.subr.mxu0 0.0
    %38 = vmatpush1.msra.mxu0 0.0
    %39 = vmatprep.subr.mxu0 0.0
    %40 = vmatpush1.msra.mxu0 0.0
    %41 = vmatprep.subr.mxu0 0.0
    %42 = vmatpush1.msra.mxu0 0.0
    %43 = vmatprep.subr.mxu0 0.0
    %44 = vmatpush1.msra.mxu0 0.0
    %45 = vmatprep.subr.mxu0 0.0
    %46 = vmatpush1.msra.mxu0 0.0
    %47 = vmatprep.subr.mxu0 0.0
    %48 = vmatpush1.msra.mxu0 0.0
    %49 = vmatprep.subr.mxu0 0.0
    %50 = vmatpush1.msra.mxu0 0.0
    %51 = vmatprep.subr.mxu0 0.0
    %52 = vmatpush1.msra.mxu0 0.0
    %53 = vmatprep.subr.mxu0 0.0
    %54 = vmatpush1.msra.mxu0 0.0
    %55 = vmatprep.subr.mxu0 0.0
    %56 = vmatpush1.msra.mxu0 0.0
    %57 = vmatprep.subr.mxu0 0.0
    %58 = vmatpush1.msra.mxu0 0.0
    %59 = vmatprep.subr.mxu0 0.0
    %60 = vmatpush1.msra.mxu0 0.0
    %61 = vmatprep.subr.mxu0 0.0
    %62 = vmatpush1.msra.mxu0 0.0
    %63 = vmatprep.subr.mxu0 0.0
    %64 = vmatpush1.msra.mxu0 0.0
    %65 = vmatprep.subr.mxu0 0.0
    %66 = vmatpush1.msra.mxu0 %v25
    %67 = vmatprep.subr.mxu0 0.0
    %68 = vmatpush1.msra.mxu0 %v24
    %69 = vmatprep.subr.mxu0 0.0
    %70 = vmatpush2.msra.mxu0 0.0
    %71 = vmatprep.subr.mxu0 0.0
    %72 = vmatpush2.msra.mxu0 0.0
    %73 = vmatprep.subr.mxu0 0.0
    %74 = vmatpush2.msra.mxu0 0.0
    %75 = vmatprep.subr.mxu0 0.0
    %76 = vmatpush2.msra.mxu0 0.0
    %77 = vmatprep.subr.mxu0 0.0
    %78 = vmatpush2.msra.mxu0 0.0
    %79 = vmatprep.subr.mxu0 0.0
    %80 = vmatpush2.msra.mxu0 0.0
    %81 = vmatprep.subr.mxu0 0.0
    %82 = vmatpush2.msra.mxu0 0.0
    %83 = vmatprep.subr.mxu0 0.0
    %84 = vmatpush2.msra.mxu0 0.0
    %85 = vmatprep.subr.mxu0 0.0
    %86 = vmatpush2.msra.mxu0 0.0
    %87 = vmatprep.subr.mxu0 0.0
    %88 = vmatpush2.msra.mxu0 0.0
    %89 = vmatprep.subr.mxu0 0.0
    %90 = vmatpush2.msra.mxu0 0.0
    %91 = vmatprep.subr.mxu0 0.0
    %92 = vmatpush2.msra.mxu0 0.0
    %93 = vmatprep.subr.mxu0 0.0
    %94 = vmatpush2.msra.mxu0 0.0
    %95 = vmatprep.subr.mxu0 0.0
    %96 = vmatpush2.msra.mxu0 0.0
    %97 = vmatprep.subr.mxu0 0.0
    %98 = vmatpush2.msra.mxu0 0.0
    %99 = vmatprep.subr.mxu0 0.0
    %100 = vmatpush2.msra.mxu0 0.0
    %101 = vmatprep.mubr.f32.mxu0 0.0
    %102 = vmatmul.mubr.f32.gmra.mxu0 %v35
    %v103 = vpop.f32.mrf.mxu0
    %v104 = vadd.f32 %v31, %v103
    %v105 = vpop.f32.mrf.mxu0
    %106 = vdwg.mxu0
    %v107 = vmax.f32 %v104, 0.0
    %v108 = vld [vmem:[%s3] sm:$0xff]
    %v109 = vld [vmem:[%s3 + $0x8] sm:$0xff]
    %v110 = vld [vmem:[%s3 + $0x10] sm:$0xff]
    %v111 = vld [vmem:[%s3 + $0x18] sm:$0xff]
    %v112 = vld [vmem:[%s4] sm:$0x1]
    %v114 = vlaneseq
    %v115 = vshrl.u32 %v114, 7
    %v116 = vsub.s32 0, %v115
    %v117 = vrot.slane %v112, %v116
    %vm119 = vcmask 261120
    %v121 = vsel %vm119, %v107, 0
    %123 = vmatprep.subr.mxu0 0.0
    %124 = vmatpush1.msra.mxu0 0.0
    %125 = vmatprep.subr.mxu0 0.0
    %126 = vmatpush1.msra.mxu0 0.0
    %127 = vmatprep.subr.mxu0 0.0
    %128 = vmatpush1.msra.mxu0 0.0
    %129 = vmatprep.subr.mxu0 0.0
    %130 = vmatpush1.msra.mxu0 0.0
    %131 = vmatprep.subr.mxu0 0.0
    %132 = vmatpush1.msra.mxu0 0.0
    %133 = vmatprep.subr.mxu0 0.0
    %134 = vmatpush1.msra.mxu0 0.0
    %135 = vmatprep.subr.mxu0 0.0
    %136 = vmatpush1.msra.mxu0 0.0
    %137 = vmatprep.subr.mxu0 0.0
    %138 = vmatpush1.msra.mxu0 0.0
    %139 = vmatprep.subr.mxu0 0.0
    %140 = vmatpush1.msra.mxu0 0.0
    %141 = vmatprep.subr.mxu0 0.0
    %142 = vmatpush1.msra.mxu0 0.0
    %143 = vmatprep.subr.mxu0 0.0
    %144 = vmatpush1.msra.mxu0 0.0
    %145 = vmatprep.subr.mxu0 0.0
    %146 = vmatpush1.msra.mxu0 0.0
    %147 = vmatprep.subr.mxu0 0.0
    %148 = vmatpush1.msra.mxu0 %v111
    %149 = vmatprep.subr.mxu0 0.0
    %150 = vmatpush1.msra.mxu0 %v110
    %151 = vmatprep.subr.mxu0 0.0
    %152 = vmatpush1.msra.mxu0 %v109
    %153 = vmatprep.subr.mxu0 0.0
    %154 = vmatpush1.msra.mxu0 %v108
    %155 = vmatprep.subr.mxu0 0.0
    %156 = vmatpush2.msra.mxu0 0.0
    %157 = vmatprep.subr.mxu0 0.0
    %158 = vmatpush2.msra.mxu0 0.0
    %159 = vmatprep.subr.mxu0 0.0
    %160 = vmatpush2.msra.mxu0 0.0
    %161 = vmatprep.subr.mxu0 0.0
    %162 = vmatpush2.msra.mxu0 0.0
    %163 = vmatprep.subr.mxu0 0.0
    %164 = vmatpush2.msra.mxu0 0.0
    %165 = vmatprep.subr.mxu0 0.0
    %166 = vmatpush2.msra.mxu0 0.0
    %167 = vmatprep.subr.mxu0 0.0
    %168 = vmatpush2.msra.mxu0 0.0
    %169 = vmatprep.subr.mxu0 0.0
    %170 = vmatpush2.msra.mxu0 0.0
    %171 = vmatprep.subr.mxu0 0.0
    %172 = vmatpush2.msra.mxu0 0.0
    %173 = vmatprep.subr.mxu0 0.0
    %174 = vmatpush2.msra.mxu0 0.0
    %175 = vmatprep.subr.mxu0 0.0
    %176 = vmatpush2.msra.mxu0 0.0
    %177 = vmatprep.subr.mxu0 0.0
    %178 = vmatpush2.msra.mxu0 0.0
    %179 = vmatprep.subr.mxu0 0.0
    %180 = vmatpush2.msra.mxu0 0.0
    %181 = vmatprep.subr.mxu0 0.0
    %182 = vmatpush2.msra.mxu0 0.0
    %183 = vmatprep.subr.mxu0 0.0
    %184 = vmatpush2.msra.mxu0 0.0
    %185 = vmatprep.subr.mxu0 0.0
    %186 = vmatpush2.msra.mxu0 0.0
    %187 = vmatprep.mubr.f32.mxu0 0.0
    %188 = vmatmul.mubr.f32.gmra.mxu0 %v121
    %v189 = vpop.f32.mrf.mxu0
    %v190 = vadd.f32 %v117, %v189
    %v191 = vpop.f32.mrf.mxu0
    %192 = vdwg.mxu0
    %v193 = vlaneseq
    %v194 = vand.u32 %v193, 127
    %vm195 = vcmp.lt.s32.totalorder %v194, 8
    %v196 = vsel %vm195, %v190, -inf
    %vm197 = vcmask 97280
    %v198 = vsel %vm197, %v196, -inf
    %199 = vmax.xlane.f32.xlu0 %v198
    %v200 = vpop.xlane.xlu0 %199
    %v201 = vsub.f32 %v190, %v200
    %v202 = vsel %vm195, %v201, -inf
    %v203 = vmul.f32 %v202, 1.442695
    %v204 = vpow.pop %v203
    %v205 = vsel %vm197, %v204, 0.0
    %206 = vadd.xlane.f32.xlu0 %v205
    %v207 = vpop.xlane.xlu0 %206
    %v208 = vrcp.pop %v207
    %v209 = vmul.f32 %v204, %v208
    %vm210 = vcmask 64512
    %211 = vst.msk [vmem:[#allocation2] sm:$0xff] %vm210, %v209
    %v212 = vtanh.pop %v190
    %214 = vrot.lane.b32.xlu0 %v212, 120
    %v215 = vpop.permute.xlu0 %214
    %vm217 = vcmask 31744
    %218 = vst.msk [vmem:[%s6] sm:$0xff] %vm217, %v215
    // Predicated region
    $region22: #{tpu_custom_call.1} parent=1 // pred_check
      _
    $region23: #{tpu_custom_call.1} parent=1 // pred_check_branch
      %220 = sbr.rel (0) target = $region25
    $region24: #{tpu_custom_call.1} parent=1 // pred_region
      %s222 = ssub.s32 128, 128
      %223 = vsyncadd [#allocation3], %s222
      %s225 = sshll.u32 [#allocation2], 4
      %s226 = int_to_ptr.vmem [resolvable:$true] %s225
      %228 = dma.vmem_to_hbm [thread:$0]  %s226, 128, %s5, [#allocation3]
    $region25: #{tpu_custom_call.1} parent=1 // pred_fallthru
      _
    // Predicated region
    $region26: #{tpu_custom_call.1} parent=1 // pred_check
      _
    $region27: #{tpu_custom_call.1} parent=1 // pred_check_branch
      %230 = sbr.rel (0) target = $region29
    $region28: #{tpu_custom_call.1} parent=1 // pred_region
      _
    $region29: #{tpu_custom_call.1} parent=1 // pred_fallthru
      _
    // Predicated region
    $region30: #{tpu_custom_call.1} parent=1 // pred_check
      _
    $region31: #{tpu_custom_call.1} parent=1 // pred_check_branch
      %232 = sbr.rel (0) target = $region33
    $region32: #{tpu_custom_call.1} parent=1 // pred_region
      %233 = dma.done [#allocation3], 128
    $region33: #{tpu_custom_call.1} parent=1 // pred_fallthru
      _
    // Predicated region
    $region34: #{tpu_custom_call.1} parent=1 // pred_check
      _
    $region35: #{tpu_custom_call.1} parent=1 // pred_check_branch
      %235 = sbr.rel (0) target = $region37
    $region36: #{tpu_custom_call.1} parent=1 // pred_region
      _
    $region37: #{tpu_custom_call.1} parent=1 // pred_fallthru
      _
    %236 = vsyncpa [#allocation3], 1

</llo_original>
